<compile_context>
chip_gen: v5e
topology: v5e:2x2
jax: 0.10.0
libtpu: 0.0.40
codegen_flags: <defaults>
</compile_context>

<pallas_src>
import functools

import jax
import jax.numpy as jnp
from jax.experimental import pallas as pl
from jax.experimental.pallas import tpu as pltpu

_LANE = 128      # vreg lane width: Fout padded to this
_SUBLANE = 8     # vreg sublane width: Fin / batch padded to this


def _round_up(n, m):
    return ((n + m - 1) // m) * m


def _fused_mlp_kernel(*refs):
    """refs = (x_ref, w0_ref, b0_ref, ..., w_{L-1}_ref, b_{L-1}_ref, o_ref).

    Computes  h = sigmoid(h[:, :Fin_i] @ W_i + b_i)  for every layer, entirely
    in VMEM.  Each W_i has Fin padded only to a multiple of 8 (extra rows are
    zero) and Fout padded to a multiple of 128 lanes; the final store slices
    h down to the true number of output features.
    """
    x_ref = refs[0]
    o_ref = refs[-1]
    param_refs = refs[1:-1]
    n_layers = len(param_refs) // 2

    h = x_ref[...]                                    # (B, F0) f32
    for i in range(n_layers):
        w = param_refs[2 * i][...]                    # (Fin_pad8, Fout_pad128)
        b = param_refs[2 * i + 1][...]                # (1, Fout_pad128)
        fin = w.shape[0]                              # static
        h = jax.nn.sigmoid(
            jnp.dot(h[:, :fin], w, preferred_element_type=jnp.float32) + b)
    o_ref[...] = h[:, :o_ref.shape[1]].astype(o_ref.dtype)


def _fused_forward_pallas(x, flat_params, out_features):
    """Single pallas_call over the full layer stack; everything VMEM-resident."""
    batch = x.shape[0]
    vmem_spec = pl.BlockSpec(memory_space=pltpu.MemorySpace.VMEM)
    return pl.pallas_call(
        _fused_mlp_kernel,
        out_shape=jax.ShapeDtypeStruct((batch, out_features), jnp.float32),
        in_specs=[vmem_spec] * (1 + len(flat_params)),
        out_specs=vmem_spec,
    )(x, *flat_params)


@functools.partial(jax.jit, static_argnames=("out_features",))
def _forward(x, flat_params, out_features):
    """Run the fused kernel; only pad the batch dim if it isn't 8-aligned."""
    batch = x.shape[0]
    x = x.astype(jnp.float32)
    if batch % _SUBLANE == 0:                         # trace-time check
        return _fused_forward_pallas(x, flat_params, out_features)
    batch_pad = _round_up(batch, _SUBLANE)
    x_pad = jnp.zeros((batch_pad, x.shape[1]), jnp.float32).at[:batch].set(x)
    y = _fused_forward_pallas(x_pad, flat_params, out_features)
    return y[:batch]


class RegressionModelPallas:
    """JAX/Pallas port of the PyTorch RegressionModel (MLP with sigmoid)."""

    def __init__(self, layers, input_features, key):
        self.layers = list(layers)
        self.input_features = input_features
        self.params = []          # unpadded (w, b), for reference checking
        flat_padded = []          # [w0_pad, b0_pad, w1_pad, b1_pad, ...]
        fin = input_features
        for neuron in self.layers:
            key, wk, bk = jax.random.split(key, 3)
            # Mimic nn.Linear's uniform(-1/sqrt(fin), 1/sqrt(fin)) init.
            bound = 1.0 / (fin ** 0.5)
            w = jax.random.uniform(
                wk, (fin, neuron), jnp.float32, minval=-bound, maxval=bound)
            b = jax.random.uniform(
                bk, (1, neuron), jnp.float32, minval=-bound, maxval=bound)
            self.params.append((w, b))

            # Fin padded only to a sublane multiple; Fout padded to 128 lanes.
            # Padded rows/cols MUST remain zero (see correctness note above).
            fin_pad = _round_up(fin, _SUBLANE)
            fout_pad = _round_up(neuron, _LANE)
            w_pad = jnp.zeros((fin_pad, fout_pad), jnp.float32)
            w_pad = w_pad.at[:fin, :neuron].set(w)
            b_pad = jnp.zeros((1, fout_pad), jnp.float32)
            b_pad = b_pad.at[:, :neuron].set(b)
            flat_padded += [w_pad, b_pad]
            fin = neuron
        self.flat_padded = tuple(flat_padded)

    def __call__(self, x):
        return _forward(x, self.flat_padded, self.layers[-1])


if __name__ == "__main__":
    key = jax.random.PRNGKey(0)
    key, xk = jax.random.split(key)

    batch = 8
    input_features = 32
    layers = [64, 32, 16]

    x = jax.random.normal(xk, (batch, input_features), dtype=jnp.float32)

    model = RegressionModelPallas(layers, input_features, key)
    out = model(x)
    out = jax.block_until_ready(out)

    # Pure-JAX reference of the same forward pass (unpadded params).
    ref = x
    for w, b in model.params:
        ref = jax.nn.sigmoid(ref @ w + b)

    assert out.shape == (batch, layers[-1])
    assert jnp.allclose(out, ref, atol=1e-5, rtol=1e-5)

    print("KERNEL_OK")
</pallas_src>

<mosaic_0001>
module attributes {stable_mosaic.version = 11 : i64} {
  func.func @_fused_mlp_kernel(%arg0: memref<8x32xf32, #tpu.memory_space<vmem>>, %arg1: memref<32x128xf32, #tpu.memory_space<vmem>>, %arg2: memref<1x128xf32, #tpu.memory_space<vmem>>, %arg3: memref<64x128xf32, #tpu.memory_space<vmem>>, %arg4: memref<1x128xf32, #tpu.memory_space<vmem>>, %arg5: memref<32x128xf32, #tpu.memory_space<vmem>>, %arg6: memref<1x128xf32, #tpu.memory_space<vmem>>, %arg7: memref<8x16xf32, #tpu.memory_space<vmem>>) attributes {dimension_semantics = [], scalar_prefetch = 0 : i64, scratch_operands = 0 : i64, tpu.core_type = #tpu.core_type<tc>} {
    %c0 = arith.constant 0 : index
    %c0_0 = arith.constant 0 : index
    %0 = vector.load %arg0[%c0, %c0_0] : memref<8x32xf32, #tpu.memory_space<vmem>>, vector<8x32xf32>
    %c0_1 = arith.constant 0 : index
    %c0_2 = arith.constant 0 : index
    %1 = vector.load %arg1[%c0_1, %c0_2] : memref<32x128xf32, #tpu.memory_space<vmem>>, vector<32x128xf32>
    %c0_3 = arith.constant 0 : index
    %c0_4 = arith.constant 0 : index
    %2 = vector.load %arg2[%c0_3, %c0_4] : memref<1x128xf32, #tpu.memory_space<vmem>>, vector<1x128xf32>
    %cst = arith.constant dense<0.000000e+00> : vector<8x128xf32>
    %3 = tpu.matmul %0, %1, %cst {dimension_numbers = #tpu.dot_dimension_numbers<[1], [0], [0], [1], [0, 0, 1, 1], [], []>} : vector<8x32xf32>, vector<32x128xf32>, vector<8x128xf32> -> vector<8x128xf32>
    %4 = vector.broadcast %2 : vector<1x128xf32> to vector<8x128xf32>
    %5 = arith.addf %3, %4 : vector<8x128xf32>
    %6 = arith.negf %5 : vector<8x128xf32>
    %7 = math.exp %6 : vector<8x128xf32>
    %cst_5 = arith.constant 1.000000e+00 : f32
    %8 = vector.broadcast %cst_5 : f32 to vector<8x128xf32>
    %9 = arith.addf %8, %7 : vector<8x128xf32>
    %10 = arith.divf %8, %9 : vector<8x128xf32>
    %c0_6 = arith.constant 0 : index
    %c0_7 = arith.constant 0 : index
    %11 = vector.load %arg3[%c0_6, %c0_7] : memref<64x128xf32, #tpu.memory_space<vmem>>, vector<64x128xf32>
    %c0_8 = arith.constant 0 : index
    %c0_9 = arith.constant 0 : index
    %12 = vector.load %arg4[%c0_8, %c0_9] : memref<1x128xf32, #tpu.memory_space<vmem>>, vector<1x128xf32>
    %13 = vector.extract_strided_slice %10 {offsets = [0, 0], sizes = [8, 64], strides = [1, 1]} : vector<8x128xf32> to vector<8x64xf32>
    %cst_10 = arith.constant dense<0.000000e+00> : vector<8x128xf32>
    %14 = tpu.matmul %13, %11, %cst_10 {dimension_numbers = #tpu.dot_dimension_numbers<[1], [0], [0], [1], [0, 0, 1, 1], [], []>} : vector<8x64xf32>, vector<64x128xf32>, vector<8x128xf32> -> vector<8x128xf32>
    %15 = vector.broadcast %12 : vector<1x128xf32> to vector<8x128xf32>
    %16 = arith.addf %14, %15 : vector<8x128xf32>
    %17 = arith.negf %16 : vector<8x128xf32>
    %18 = math.exp %17 : vector<8x128xf32>
    %cst_11 = arith.constant 1.000000e+00 : f32
    %19 = vector.broadcast %cst_11 : f32 to vector<8x128xf32>
    %20 = arith.addf %19, %18 : vector<8x128xf32>
    %21 = arith.divf %19, %20 : vector<8x128xf32>
    %c0_12 = arith.constant 0 : index
    %c0_13 = arith.constant 0 : index
    %22 = vector.load %arg5[%c0_12, %c0_13] : memref<32x128xf32, #tpu.memory_space<vmem>>, vector<32x128xf32>
    %c0_14 = arith.constant 0 : index
    %c0_15 = arith.constant 0 : index
    %23 = vector.load %arg6[%c0_14, %c0_15] : memref<1x128xf32, #tpu.memory_space<vmem>>, vector<1x128xf32>
    %24 = vector.extract_strided_slice %21 {offsets = [0, 0], sizes = [8, 32], strides = [1, 1]} : vector<8x128xf32> to vector<8x32xf32>
    %cst_16 = arith.constant dense<0.000000e+00> : vector<8x128xf32>
    %25 = tpu.matmul %24, %22, %cst_16 {dimension_numbers = #tpu.dot_dimension_numbers<[1], [0], [0], [1], [0, 0, 1, 1], [], []>} : vector<8x32xf32>, vector<32x128xf32>, vector<8x128xf32> -> vector<8x128xf32>
    %26 = vector.broadcast %23 : vector<1x128xf32> to vector<8x128xf32>
    %27 = arith.addf %25, %26 : vector<8x128xf32>
    %28 = arith.negf %27 : vector<8x128xf32>
    %29 = math.exp %28 : vector<8x128xf32>
    %cst_17 = arith.constant 1.000000e+00 : f32
    %30 = vector.broadcast %cst_17 : f32 to vector<8x128xf32>
    %31 = arith.addf %30, %29 : vector<8x128xf32>
    %32 = arith.divf %30, %31 : vector<8x128xf32>
    %33 = vector.extract_strided_slice %32 {offsets = [0, 0], sizes = [8, 16], strides = [1, 1]} : vector<8x128xf32> to vector<8x16xf32>
    %c0_18 = arith.constant 0 : index
    %c0_19 = arith.constant 0 : index
    %34 = vector.load %arg7[%c0_18, %c0_19] : memref<8x16xf32, #tpu.memory_space<vmem>>, vector<8x16xf32>
    tpu.vector_store %arg7[%c0_18, %c0_19], %33 {strides = array<i32>} : memref<8x16xf32, #tpu.memory_space<vmem>>, vector<8x16xf32>,
    return
  }
}

</mosaic_0001>

<llo_original>
// kernel: _forward.1
$region0: #{_forward.1}
  #allocation0 [shape = 'u32[]', space=smem, size = 0x4, offset = 0x4, fixed_abs, tag = 'smem constant byte address 0x4 - core index']
  #allocation1 [shape = 'u32[72,128]{1,0:T(1,128)}', space=vmem, size = 0x9000, scoped, tag = 'internal scratch']
  %s0 = inlined_call_operand.hbm [shape: f32[8,32], index: 0, kind: input, shape index: {}]
  %s1 = inlined_call_operand.hbm [shape: f32[32,128], index: 1, kind: input, shape index: {}]
  %s2 = inlined_call_operand.vmem [shape: f32[1,128], index: 2, kind: input, shape index: {}]
  %s3 = inlined_call_operand.hbm [shape: f32[64,128], index: 3, kind: input, shape index: {}]
  %s4 = inlined_call_operand.vmem [shape: f32[1,128], index: 4, kind: input, shape index: {}]
  %s5 = inlined_call_operand.hbm [shape: f32[32,128], index: 5, kind: input, shape index: {}]
  %s6 = inlined_call_operand.vmem [shape: f32[1,128], index: 6, kind: input, shape index: {}]
  %s7 = inlined_call_operand.hbm [shape: f32[8,16], index: 7, kind: output, shape index: {}]
  %s8 = sld [smem:[#allocation0]]
  $region54: #{_forward.1} parent=0
    _
  %s10 = ssub.s32 1, %s8
  %s11 = scalar_select 0, %s10, %s8
  $region1: #{_forward.1} parent=0
    #allocation2 [shape = 'u8[4096]{0}', space=vmem, size = 0x1000, scoped, tag = 'input window, operand 0, single buffered']
    #allocation3 [shape = 's32[1]{0}', space=sflag, size = 0x4, scoped, tag = 'scoped memory for _forward.1']
    #allocation4 [shape = 's32[1]{0}', space=sflag, size = 0x4, scoped, tag = 'scoped memory for _forward.1']
    #allocation5 [shape = 'u8[16384]{0}', space=vmem, size = 0x4000, scoped, tag = 'input window, operand 1, single buffered']
    #allocation6 [shape = 's32[1]{0}', space=sflag, size = 0x4, scoped, tag = 'scoped memory for _forward.1']
    #allocation7 [shape = 'u8[32768]{0}', space=vmem, size = 0x8000, scoped, tag = 'input window, operand 3, single buffered']
    #allocation8 [shape = 'u8[16384]{0}', space=vmem, size = 0x4000, scoped, tag = 'input window, operand 5, single buffered']
    #allocation9 [shape = 's32[1]{0}', space=sflag, size = 0x4, scoped, tag = 'scoped memory for _forward.1']
    #allocation10 [shape = 'u8[4096]{0}', space=vmem, size = 0x1000, scoped, tag = 'output window, operand 0, single buffered']
    %12 = vsyncpa [#allocation3], 0
    %13 = vsyncpa [#allocation6], 0
    %14 = vsyncpa [#allocation9], 0
    %15 = vsyncpa [#allocation4], 0
    // Predicated region
    $region2: #{_forward.1} parent=1 // pred_check
      _
    $region3: #{_forward.1} parent=1 // pred_check_branch
      %17 = sbr.rel (0) target = $region5
    $region4: #{_forward.1} parent=1 // pred_region
      %19 = vsyncadd [#allocation3], 0
      %s21 = sshll.u32 %s0, 4
      %s22 = int_to_ptr.hbm [resolvable:$true] %s21
      %s23 = sshll.u32 [#allocation2], 4
      %s24 = int_to_ptr.vmem [resolvable:$true] %s23
      %26 = dma.hbm_to_vmem [thread:$0]  %s22, 128, %s24, [#allocation3]
    $region5: #{_forward.1} parent=1 // pred_fallthru
      _
    // Predicated region
    $region6: #{_forward.1} parent=1 // pred_check
      _
    $region7: #{_forward.1} parent=1 // pred_check_branch
      %28 = sbr.rel (0) target = $region9
    $region8: #{_forward.1} parent=1 // pred_region
      %30 = vsyncadd [#allocation6], 0
      %s31 = sshll.u32 %s1, 4
      %s32 = int_to_ptr.hbm [resolvable:$true] %s31
      %s33 = sshll.u32 [#allocation5], 4
      %s34 = int_to_ptr.vmem [resolvable:$true] %s33
      %39 = dma.hbm_to_vmem [thread:$0]  %s32, 512, %s34, [#allocation6], 128, 128, 8
    $region9: #{_forward.1} parent=1 // pred_fallthru
      _
    // Predicated region
    $region10: #{_forward.1} parent=1 // pred_check
      _
    $region11: #{_forward.1} parent=1 // pred_check_branch
      %41 = sbr.rel (0) target = $region13
    $region12: #{_forward.1} parent=1 // pred_region
      _
    $region13: #{_forward.1} parent=1 // pred_fallthru
      _
    // Predicated region
    $region14: #{_forward.1} parent=1 // pred_check
      _
    $region15: #{_forward.1} parent=1 // pred_check_branch
      %43 = sbr.rel (0) target = $region17
    $region16: #{_forward.1} parent=1 // pred_region
      %45 = vsyncadd [#allocation6], 0
      %s46 = sshll.u32 %s3, 4
      %s47 = int_to_ptr.hbm [resolvable:$true] %s46
      %s48 = sshll.u32 [#allocation7], 4
      %s49 = int_to_ptr.vmem [resolvable:$true] %s48
      %54 = dma.hbm_to_vmem [thread:$0]  %s47, 1024, %s49, [#allocation6], 128, 128, 8
    $region17: #{_forward.1} parent=1 // pred_fallthru
      _
    // Predicated region
    $region18: #{_forward.1} parent=1 // pred_check
      _
    $region19: #{_forward.1} parent=1 // pred_check_branch
      %56 = sbr.rel (0) target = $region21
    $region20: #{_forward.1} parent=1 // pred_region
      _
    $region21: #{_forward.1} parent=1 // pred_fallthru
      _
    // Predicated region
    $region22: #{_forward.1} parent=1 // pred_check
      _
    $region23: #{_forward.1} parent=1 // pred_check_branch
      %58 = sbr.rel (0) target = $region25
    $region24: #{_forward.1} parent=1 // pred_region
      %60 = vsyncadd [#allocation9], 0
      %s61 = sshll.u32 %s5, 4
      %s62 = int_to_ptr.hbm [resolvable:$true] %s61
      %s63 = sshll.u32 [#allocation8], 4
      %s64 = int_to_ptr.vmem [resolvable:$true] %s63
      %69 = dma.hbm_to_vmem [thread:$0]  %s62, 512, %s64, [#allocation9], 128, 128, 8
    $region25: #{_forward.1} parent=1 // pred_fallthru
      _
    // Predicated region
    $region26: #{_forward.1} parent=1 // pred_check
      _
    $region27: #{_forward.1} parent=1 // pred_check_branch
      %71 = sbr.rel (0) target = $region29
    $region28: #{_forward.1} parent=1 // pred_region
      _
    $region29: #{_forward.1} parent=1 // pred_fallthru
      _
    // Predicated region
    $region30: #{_forward.1} parent=1 // pred_check
      _
    $region31: #{_forward.1} parent=1 // pred_check_branch
      %73 = sbr.rel (0) target = $region33
    $region32: #{_forward.1} parent=1 // pred_region
      %75 = dma.done [#allocation3], 128
    $region33: #{_forward.1} parent=1 // pred_fallthru
      _
    // Predicated region
    $region34: #{_forward.1} parent=1 // pred_check
      _
    $region35: #{_forward.1} parent=1 // pred_check_branch
      %77 = sbr.rel (0) target = $region37
    $region36: #{_forward.1} parent=1 // pred_region
      %79 = dma.done [#allocation6], 512
    $region37: #{_forward.1} parent=1 // pred_fallthru
      _
    // Predicated region
    $region38: #{_forward.1} parent=1 // pred_check
      _
    $region39: #{_forward.1} parent=1 // pred_check_branch
      %81 = sbr.rel (0) target = $region41
    $region40: #{_forward.1} parent=1 // pred_region
      %83 = dma.done [#allocation6], 1024
    $region41: #{_forward.1} parent=1 // pred_fallthru
      _
    // Predicated region
    $region42: #{_forward.1} parent=1 // pred_check
      _
    $region43: #{_forward.1} parent=1 // pred_check_branch
      %85 = sbr.rel (0) target = $region45
    $region44: #{_forward.1} parent=1 // pred_region
      %87 = dma.done [#allocation9], 512
    $region45: #{_forward.1} parent=1 // pred_fallthru
      _
    %v88 = vld [vmem:[#allocation2] sm:$0xff]
    %v89 = vld [vmem:[#allocation5] sm:$0xff]
    %v90 = vld [vmem:[#allocation5 + $0x8] sm:$0xff]
    %v91 = vld [vmem:[#allocation5 + $0x10] sm:$0xff]
    %v92 = vld [vmem:[#allocation5 + $0x18] sm:$0xff]
    %v93 = vld [vmem:[%s2] sm:$0x1]
    %v95 = vperm.slane %v93, 0
    %vm97 = vcmask 261120
    %v99 = vsel %vm97, %v88, 0
    %101 = vmatpush.msra.mxu0 0.0
    %102 = vmatpush.msra.mxu0 0.0
    %103 = vmatpush.msra.mxu0 0.0
    %104 = vmatpush.msra.mxu0 0.0
    %105 = vmatpush.msra.mxu0 0.0
    %106 = vmatpush.msra.mxu0 0.0
    %107 = vmatpush.msra.mxu0 0.0
    %108 = vmatpush.msra.mxu0 0.0
    %109 = vmatpush.msra.mxu0 0.0
    %110 = vmatpush.msra.mxu0 0.0
    %111 = vmatpush.msra.mxu0 0.0
    %112 = vmatpush.msra.mxu0 0.0
    %113 = vmatpush.msra.mxu0 %v92
    %114 = vmatpush.msra.mxu0 %v91
    %115 = vmatpush.msra.mxu0 %v90
    %116 = vmatpush.msra.mxu0 %v89
    %117 = vmatmul.f32.gmra.mxu0 %v99
    %v118 = vpop.f32.mrf.mxu0
    %v119 = vadd.f32 %v95, %v118
    %120 = vdwg.mxu0
    %v121 = vxor.u32 %v119, 2147483648
    %v122 = vmul.f32 %v121, 1.442695
    %v123 = vpow.pop %v122
    %v124 = vadd.f32 %v123, 1.0
    %v125 = vrcp.pop %v124
    %v126 = vmul.f32 %v124, %v125
    %v127 = vsub.f32 1.0, %v126
    %v128 = vmul.f32 %v125, %v127
    %v129 = vadd.f32 %v125, %v128
    %vm130 = vweird.f32 %v124
    %vm131 = vweird.f32 %v125
    %vm132 = vmor %vm130, %vm131
    %v133 = vsel %vm132, %v125, %v129
    %v134 = vand.u32 2147483647, %v124
    %vm135 = vcmp.eq.f32.partialorder %v134, 8.507059e+37
    %v136 = vand.u32 %v124, 2147483648
    %v137 = vor.u32 1.1754944e-38, %v136
    %v138 = vsel %vm135, %v137, %v133
    %v139 = vmul.f32 1.0, %v138
    %v140 = vld [vmem:[#allocation7] sm:$0xff]
    %v141 = vld [vmem:[#allocation7 + $0x8] sm:$0xff]
    %v142 = vld [vmem:[#allocation7 + $0x10] sm:$0xff]
    %v143 = vld [vmem:[#allocation7 + $0x18] sm:$0xff]
    %v144 = vld [vmem:[#allocation7 + $0x20] sm:$0xff]
    %v145 = vld [vmem:[#allocation7 + $0x28] sm:$0xff]
    %v146 = vld [vmem:[#allocation7 + $0x30] sm:$0xff]
    %v147 = vld [vmem:[#allocation7 + $0x38] sm:$0xff]
    %v148 = vld [vmem:[%s4] sm:$0x1]
    %v150 = vperm.slane %v148, 0
    %vm152 = vcmask 523264
    %v154 = vsel %vm152, %v139, 0
    %156 = vmatpush.msra.mxu0 0.0
    %157 = vmatpush.msra.mxu0 0.0
    %158 = vmatpush.msra.mxu0 0.0
    %159 = vmatpush.msra.mxu0 0.0
    %160 = vmatpush.msra.mxu0 0.0
    %161 = vmatpush.msra.mxu0 0.0
    %162 = vmatpush.msra.mxu0 0.0
    %163 = vmatpush.msra.mxu0 0.0
    %164 = vmatpush.msra.mxu0 %v147
    %165 = vmatpush.msra.mxu0 %v146
    %166 = vmatpush.msra.mxu0 %v145
    %167 = vmatpush.msra.mxu0 %v144
    %168 = vmatpush.msra.mxu0 %v143
    %169 = vmatpush.msra.mxu0 %v142
    %170 = vmatpush.msra.mxu0 %v141
    %171 = vmatpush.msra.mxu0 %v140
    %172 = vmatmul.f32.gmra.mxu0 %v154
    %v173 = vpop.f32.mrf.mxu0
    %v174 = vadd.f32 %v150, %v173
    %175 = vdwg.mxu0
    %v176 = vxor.u32 %v174, 2147483648
    %v177 = vmul.f32 %v176, 1.442695
    %v178 = vpow.pop %v177
    %v179 = vadd.f32 %v178, 1.0
    %v180 = vrcp.pop %v179
    %v181 = vmul.f32 %v179, %v180
    %v182 = vsub.f32 1.0, %v181
    %v183 = vmul.f32 %v180, %v182
    %v184 = vadd.f32 %v180, %v183
    %vm185 = vweird.f32 %v179
    %vm186 = vweird.f32 %v180
    %vm187 = vmor %vm185, %vm186
    %v188 = vsel %vm187, %v180, %v184
    %v189 = vand.u32 2147483647, %v179
    %vm190 = vcmp.eq.f32.partialorder %v189, 8.507059e+37
    %v191 = vand.u32 %v179, 2147483648
    %v192 = vor.u32 1.1754944e-38, %v191
    %v193 = vsel %vm190, %v192, %v188
    %v194 = vmul.f32 1.0, %v193
    %v195 = vld [vmem:[#allocation8] sm:$0xff]
    %v196 = vld [vmem:[#allocation8 + $0x8] sm:$0xff]
    %v197 = vld [vmem:[#allocation8 + $0x10] sm:$0xff]
    %v198 = vld [vmem:[#allocation8 + $0x18] sm:$0xff]
    %v199 = vld [vmem:[%s6] sm:$0x1]
    %v201 = vperm.slane %v199, 0
    %v204 = vsel %vm97, %v194, 0
    %206 = vmatpush.msra.mxu0 0.0
    %207 = vmatpush.msra.mxu0 0.0
    %208 = vmatpush.msra.mxu0 0.0
    %209 = vmatpush.msra.mxu0 0.0
    %210 = vmatpush.msra.mxu0 0.0
    %211 = vmatpush.msra.mxu0 0.0
    %212 = vmatpush.msra.mxu0 0.0
    %213 = vmatpush.msra.mxu0 0.0
    %214 = vmatpush.msra.mxu0 0.0
    %215 = vmatpush.msra.mxu0 0.0
    %216 = vmatpush.msra.mxu0 0.0
    %217 = vmatpush.msra.mxu0 0.0
    %218 = vmatpush.msra.mxu0 %v198
    %219 = vmatpush.msra.mxu0 %v197
    %220 = vmatpush.msra.mxu0 %v196
    %221 = vmatpush.msra.mxu0 %v195
    %222 = vmatmul.f32.gmra.mxu0 %v204
    %v223 = vpop.f32.mrf.mxu0
    %v224 = vadd.f32 %v201, %v223
    %225 = vdwg.mxu0
    %v226 = vxor.u32 %v224, 2147483648
    %v227 = vmul.f32 %v226, 1.442695
    %v228 = vpow.pop %v227
    %v229 = vadd.f32 %v228, 1.0
    %v230 = vrcp.pop %v229
    %v231 = vmul.f32 %v229, %v230
    %v232 = vsub.f32 1.0, %v231
    %v233 = vmul.f32 %v230, %v232
    %v234 = vadd.f32 %v230, %v233
    %vm235 = vweird.f32 %v229
    %vm236 = vweird.f32 %v230
    %vm237 = vmor %vm235, %vm236
    %v238 = vsel %vm237, %v230, %v234
    %v239 = vand.u32 2147483647, %v229
    %vm240 = vcmp.eq.f32.partialorder %v239, 8.507059e+37
    %v241 = vand.u32 %v229, 2147483648
    %v242 = vor.u32 1.1754944e-38, %v241
    %v243 = vsel %vm240, %v242, %v238
    %v244 = vmul.f32 1.0, %v243
    %vm245 = vcmask 130048
    %246 = vst.msk [vmem:[#allocation10] sm:$0xff] %vm245, %v244
    // Predicated region
    $region46: #{_forward.1} parent=1 // pred_check
      _
    $region47: #{_forward.1} parent=1 // pred_check_branch
      %248 = sbr.rel (0) target = $region49
    $region48: #{_forward.1} parent=1 // pred_region
      %250 = vsyncadd [#allocation4], 0
      %s252 = sshll.u32 [#allocation10], 4
      %s253 = int_to_ptr.vmem [resolvable:$true] %s252
      %s254 = sshll.u32 %s7, 4
      %s255 = int_to_ptr.hbm [resolvable:$true] %s254
      %257 = dma.vmem_to_hbm [thread:$0]  %s253, 128, %s255, [#allocation4]
    $region49: #{_forward.1} parent=1 // pred_fallthru
      _
    // Predicated region
    $region50: #{_forward.1} parent=1 // pred_check
      _
    $region51: #{_forward.1} parent=1 // pred_check_branch
      %259 = sbr.rel (0) target = $region53
    $region52: #{_forward.1} parent=1 // pred_region
      %261 = dma.done [#allocation4], 128
    $region53: #{_forward.1} parent=1 // pred_fallthru
      _
    %262 = vsyncpa [#allocation3], 1
    %263 = vsyncpa [#allocation6], 1
    %264 = vsyncpa [#allocation9], 1
    %265 = vsyncpa [#allocation4], 1

</llo_original>
